<compile_context>
chip_gen: v7x
topology: tpu7x:2x2x1
jax: 0.10.0
libtpu: 0.0.40
codegen_flags: <defaults>
</compile_context>

<pallas_src>
import functools

import jax
import jax.numpy as jnp
from jax.experimental import pallas as pl
from jax.experimental.pallas import tpu as pltpu


def _round_up(x, m):
    return ((x + m - 1) // m) * m


def _per_row_loss(x_ref, t_ref, batch_size, block_rows):
    """Returns (TB, 1) f32 per-row loss, 0.0 for rows >= batch_size."""
    x = x_ref[...].astype(jnp.float32)                       # (TB, C)
    tgt = t_ref[...]                                         # (TB, 1) int32
    tb, c = x.shape

    # One-hot select of the target probability (the scatter_ in the torch code)
    # on the VPU, then a single MXU pass (dot with a ones column) instead of a
    # cross-lane XLU reduce tree.
    col = jax.lax.broadcasted_iota(jnp.int32, (tb, c), 1)
    masked = jnp.where(col == tgt, x, 0.0)                   # (TB, C)
    ones_col = jnp.ones((c, 1), jnp.float32)
    p = jnp.dot(masked, ones_col,
                preferred_element_type=jnp.float32)          # (TB, 1)

    # One transcendental per row on the EUP.  Mask the ragged tail tile
    # (rows past the real batch hold unspecified VMEM data).
    row = (pl.program_id(0) * block_rows
           + jax.lax.broadcasted_iota(jnp.int32, (tb, 1), 0))
    return jnp.where(row < batch_size, -jnp.log(p), 0.0)     # (TB, 1)


def _ce3_partial_sum_kernel(x_ref, t_ref, o_ref, *, batch_size, block_rows):
    # reduction=True path: one lane-dense (8,128) block per tile holding the
    # tile's partial sum broadcast to every element (single unmasked vst).
    loss = _per_row_loss(x_ref, t_ref, batch_size, block_rows)   # (TB, 1)
    s = jnp.sum(loss, axis=0, keepdims=True)                     # (1, 1)
    o_ref[...] = jnp.broadcast_to(s, o_ref.shape)                # (8, 128)


def _ce3_rows_kernel(x_ref, t_ref, o_ref, *, batch_size, block_rows):
    # reduction=False path: per-row losses.
    # TODO(synk): (TB,1) output stores are lane-sparse; a lane-dense (1,TB)
    # layout would need an in-kernel relayout and is left out for robustness.
    o_ref[...] = _per_row_loss(x_ref, t_ref, batch_size, block_rows)


def cross_entropy3(inputs, targets, reduction=True, block_rows=None):
    """inputs: (B, C) probabilities; targets: (B,) int class indices."""
    B, C = inputs.shape
    lanes = _round_up(C, 128)          # VMEM lane padding of one x row (f32)

    # Bytes of VMEM one batch row costs across all double-buffered blocks:
    # x block (lane-padded) + targets block (TB,1 -> 128 lanes) [+ rows out].
    bytes_per_row = lanes * 4 + 128 * 4 + (0 if reduction else 128 * 4)
    if block_rows is None:
        budget = 12 * 1024 * 1024                      # per buffered block set
        tb = max(8, (budget // bytes_per_row) // 8 * 8)
        # Ensure >= 4 tiles when B allows (v7x megacore + pipelining).
        tb = min(tb, max(8, _round_up(-(-B // 4), 8)))
    else:
        tb = _round_up(block_rows, 8)
    tb = min(tb, _round_up(B, 8))
    num_tiles = -(-B // tb)                            # cdiv

    t = targets.reshape(B, 1).astype(jnp.int32)

    compiler_params = pltpu.CompilerParams(
        dimension_semantics=("parallel",),             # independent tiles
        vmem_limit_bytes=32 * 1024 * 1024,
    )
    in_specs = [
        pl.BlockSpec((tb, C), lambda i: (i, 0)),       # last dim == full C
        pl.BlockSpec((tb, 1), lambda i: (i, 0)),
    ]

    if reduction:
        kern = functools.partial(_ce3_partial_sum_kernel,
                                 batch_size=B, block_rows=tb)
        partials = pl.pallas_call(
            kern,
            out_shape=jax.ShapeDtypeStruct((num_tiles * 8, 128), jnp.float32),
            grid_spec=pl.GridSpec(
                grid=(num_tiles,),
                in_specs=in_specs,
                out_specs=pl.BlockSpec((8, 128), lambda i: (i, 0)),
            ),
            compiler_params=compiler_params,
        )(inputs, t)
        tile_sums = partials.reshape(num_tiles, 8, 128)[:, 0, 0]
        # Mean over the ORIGINAL batch; constant 1/B multiply, no divide.
        return jnp.sum(tile_sums) * (1.0 / B)

    kern = functools.partial(_ce3_rows_kernel, batch_size=B, block_rows=tb)
    per_row = pl.pallas_call(
        kern,
        out_shape=jax.ShapeDtypeStruct((num_tiles * tb, 1), jnp.float32),
        grid_spec=pl.GridSpec(
            grid=(num_tiles,),
            in_specs=in_specs,
            out_specs=pl.BlockSpec((tb, 1), lambda i: (i, 0)),
        ),
        compiler_params=compiler_params,
    )(inputs, t)
    return per_row[:B, 0]


if __name__ == "__main__":
    key = jax.random.PRNGKey(0)
    k1, k2, k3, k4 = jax.random.split(key, 4)

    # Shapes consistent with the module (num_classes default = 65).  The torch
    # module applies log directly to `inputs`, so treat them as probabilities.
    B, C = 8, 65
    inputs = jax.nn.softmax(jax.random.normal(k1, (B, C), dtype=jnp.float32), axis=-1)
    targets = jax.random.randint(k2, (B,), 0, C, dtype=jnp.int32)

    loss = jax.block_until_ready(cross_entropy3(inputs, targets))
    ref = jnp.mean(-jnp.log(inputs[jnp.arange(B), targets]))
    assert jnp.allclose(loss, ref, rtol=1e-5, atol=1e-6), (loss, ref)

    # Multi-tile grid with a ragged tail: B=20, TB=8 -> 3 tiles, 4 masked rows.
    B2, C2 = 20, 65
    inputs2 = jax.nn.softmax(jax.random.normal(k3, (B2, C2), dtype=jnp.float32), axis=-1)
    targets2 = jax.random.randint(k4, (B2,), 0, C2, dtype=jnp.int32)

    loss2 = jax.block_until_ready(cross_entropy3(inputs2, targets2, block_rows=8))
    ref_rows2 = -jnp.log(inputs2[jnp.arange(B2), targets2])
    assert jnp.allclose(loss2, jnp.mean(ref_rows2), rtol=1e-5, atol=1e-6), (loss2, jnp.mean(ref_rows2))

    rows2 = jax.block_until_ready(
        cross_entropy3(inputs2, targets2, reduction=False, block_rows=8))
    assert jnp.allclose(rows2, ref_rows2, rtol=1e-5, atol=1e-6), (rows2, ref_rows2)

    print("KERNEL_OK")
</pallas_src>

<mosaic_0001>
module attributes {stable_mosaic.version = 11 : i64} {
  func.func @_ce3_partial_sum_kernel(%arg0: i32, %arg1: memref<8x65xf32, #tpu.memory_space<vmem>>, %arg2: memref<8x1xi32, #tpu.memory_space<vmem>>, %arg3: memref<8x128xf32, #tpu.memory_space<vmem>>) attributes {dimension_semantics = [#tpu.dimension_semantics<parallel>], iteration_bounds = array<i64: 1>, scalar_prefetch = 0 : i64, scratch_operands = 0 : i64, tpu.core_type = #tpu.core_type<tc>, window_params = [{transform_indices = @transform_0, window_bounds = array<i64: 8, 65>}, {transform_indices = @transform_1, window_bounds = array<i64: 8, 1>}, {transform_indices = @transform_2, window_bounds = array<i64: 8, 128>}]} {
    %c0 = arith.constant 0 : index
    %c0_0 = arith.constant 0 : index
    %0 = vector.load %arg1[%c0, %c0_0] : memref<8x65xf32, #tpu.memory_space<vmem>>, vector<8x65xf32>
    %c0_1 = arith.constant 0 : index
    %c0_2 = arith.constant 0 : index
    %1 = vector.load %arg2[%c0_1, %c0_2] : memref<8x1xi32, #tpu.memory_space<vmem>>, vector<8x1xi32>
    %2 = tpu.iota {dimensions = array<i32: 1>} : vector<8x65xi32>
    %3 = vector.broadcast %1 : vector<8x1xi32> to vector<8x65xi32>
    %4 = arith.cmpi eq, %2, %3 : vector<8x65xi32>
    %cst = arith.constant 0.000000e+00 : f32
    %5 = vector.broadcast %cst : f32 to vector<8x65xf32>
    %6 = arith.select %4, %0, %5 : vector<8x65xi1>, vector<8x65xf32>
    %cst_3 = arith.constant 1.000000e+00 : f32
    %7 = vector.broadcast %cst_3 : f32 to vector<65x1xf32>
    %cst_4 = arith.constant dense<0.000000e+00> : vector<8x1xf32>
    %8 = tpu.matmul %6, %7, %cst_4 {dimension_numbers = #tpu.dot_dimension_numbers<[1], [0], [0], [1], [0, 0, 1, 1], [], []>} : vector<8x65xf32>, vector<65x1xf32>, vector<8x1xf32> -> vector<8x1xf32>
    %c8_i32 = arith.constant 8 : i32
    %9 = arith.muli %arg0, %c8_i32 : i32
    %10 = tpu.iota {dimensions = array<i32: 0>} : vector<8x1xi32>
    %11 = vector.broadcast %9 : i32 to vector<8x1xi32>
    %12 = arith.addi %11, %10 : vector<8x1xi32>
    %c8_i32_5 = arith.constant 8 : i32
    %13 = vector.broadcast %c8_i32_5 : i32 to vector<8x1xi32>
    %14 = arith.cmpi slt, %12, %13 : vector<8x1xi32>
    %15 = math.log %8 : vector<8x1xf32>
    %cst_6 = arith.constant 0.000000e+00 : f32
    %16 = vector.broadcast %cst_6 : f32 to vector<8x1xf32>
    %17 = arith.subf %16, %15 : vector<8x1xf32>
    %cst_7 = arith.constant 0.000000e+00 : f32
    %18 = vector.broadcast %cst_7 : f32 to vector<8x1xf32>
    %19 = arith.select %14, %17, %18 : vector<8x1xi1>, vector<8x1xf32>
    %cst_8 = arith.constant dense<0.000000e+00> : vector<1xf32>
    %20 = vector.multi_reduction <add>, %19, %cst_8 [0] : vector<8x1xf32> to vector<1xf32>
    %21 = vector.shape_cast %20 : vector<1xf32> to vector<1x1xf32>
    %22 = vector.shape_cast %21 : vector<1x1xf32> to vector<1x1xf32>
    %23 = vector.broadcast %22 : vector<1x1xf32> to vector<8x128xf32>
    %c0_9 = arith.constant 0 : index
    %c0_10 = arith.constant 0 : index
    %24 = vector.load %arg3[%c0_9, %c0_10] : memref<8x128xf32, #tpu.memory_space<vmem>>, vector<8x128xf32>
    tpu.vector_store %arg3[%c0_9, %c0_10], %23 {strides = array<i32>} : memref<8x128xf32, #tpu.memory_space<vmem>>, vector<8x128xf32>,
    return
  }
  func.func @transform_0(%arg0: i32) -> (i32, i32) {
    %c0_i32 = arith.constant 0 : i32
    %c0_i32_0 = arith.constant 0 : i32
    return %arg0, %c0_i32 : i32, i32
  }
  func.func @transform_1(%arg0: i32) -> (i32, i32) {
    %c0_i32 = arith.constant 0 : i32
    %c0_i32_0 = arith.constant 0 : i32
    return %arg0, %c0_i32 : i32, i32
  }
  func.func @transform_2(%arg0: i32) -> (i32, i32) {
    %c0_i32 = arith.constant 0 : i32
    %c0_i32_0 = arith.constant 0 : i32
    return %arg0, %c0_i32 : i32, i32
  }
}

</mosaic_0001>

<llo_original>
// kernel: tpu_custom_call.1
$region0: #{tpu_custom_call.1}
  #allocation0 [shape = 'u32[]', space=smem, size = 0x4, offset = 0x4, fixed_abs, tag = 'smem constant byte address 0x4 - core index']
  #allocation1 [shape = 'u32[144,128]{1,0:T(1,128)}', space=vmem, size = 0x12000, scoped, tag = 'internal scratch']
  %s0 = inlined_call_operand.vmem [shape: f32[8,65], index: 0, kind: input, shape index: {}]
  %s1 = inlined_call_operand.vmem [shape: s32[8,1], index: 1, kind: input, shape index: {}]
  %s2 = inlined_call_operand.hbm [shape: f32[8,128], index: 2, kind: output, shape index: {}]
  %s3 = sld [smem:[#allocation0]]
  $region18: #{tpu_custom_call.1} parent=0
    _
  %s5 = ssub.s32 1, %s3
  %s6 = scalar_select 0, %s5, %s3
  $region1: #{tpu_custom_call.1} parent=0
    #allocation2 [shape = 'u8[4096]{0}', space=vmem, size = 0x1000, scoped, tag = 'output window, operand 0, single buffered']
    #allocation3 [shape = 's32[1]{0}', space=sflag, size = 0x4, scoped, tag = 'scoped memory for tpu_custom_call.1']
    %7 = vsyncpa [#allocation3], 0
    // Predicated region
    $region2: #{tpu_custom_call.1} parent=1 // pred_check
      _
    $region3: #{tpu_custom_call.1} parent=1 // pred_check_branch
      %9 = sbr.rel (0) target = $region5
    $region4: #{tpu_custom_call.1} parent=1 // pred_region
      _
    $region5: #{tpu_custom_call.1} parent=1 // pred_fallthru
      _
    // Predicated region
    $region6: #{tpu_custom_call.1} parent=1 // pred_check
      _
    $region7: #{tpu_custom_call.1} parent=1 // pred_check_branch
      %11 = sbr.rel (0) target = $region9
    $region8: #{tpu_custom_call.1} parent=1 // pred_region
      _
    $region9: #{tpu_custom_call.1} parent=1 // pred_fallthru
      _
    %v12 = vld [vmem:[%s0] sm:$0xff]
    %v13 = vld [vmem:[%s1] sm:$0xff]
    %v14 = vlaneseq
    %v15 = vand.u32 %v14, 127
    %16 = vset.pattern.permute.xlu0 0
    %17 = vperm.xlu0 %16, %v13
    %v18 = vpop.permute.xlu0 %17
    %vm19 = vcmp.eq.s32.totalorder %v15, %v18
    %v20 = vsel %vm19, %v12, 0.0
    %vm21 = vcmask 531456
    %v23 = vsel %vm21, %v20, 0
    %vm25 = vcmask 1040384
    %v27 = vsel %vm25, 1.0, 0
    %29 = vmatprep.subr.mxu0 0.0
    %30 = vmatpush1.msra.mxu0 1.0
    %31 = vmatprep.subr.mxu0 0.0
    %32 = vmatpush1.msra.mxu0 1.0
    %33 = vmatprep.subr.mxu0 0.0
    %34 = vmatpush1.msra.mxu0 1.0
    %35 = vmatprep.subr.mxu0 0.0
    %36 = vmatpush1.msra.mxu0 1.0
    %37 = vmatprep.subr.mxu0 0.0
    %38 = vmatpush1.msra.mxu0 1.0
    %39 = vmatprep.subr.mxu0 0.0
    %40 = vmatpush1.msra.mxu0 1.0
    %41 = vmatprep.subr.mxu0 0.0
    %42 = vmatpush1.msra.mxu0 1.0
    %43 = vmatprep.subr.mxu0 0.0
    %44 = vmatpush1.msra.mxu0 1.0
    %45 = vmatprep.subr.mxu0 0.0
    %46 = vmatpush1.msra.mxu0 %v27
    %47 = vmatprep.subr.mxu0 0.0
    %48 = vmatpush1.msra.mxu0 0.0
    %49 = vmatprep.subr.mxu0 0.0
    %50 = vmatpush1.msra.mxu0 0.0
    %51 = vmatprep.subr.mxu0 0.0
    %52 = vmatpush1.msra.mxu0 0.0
    %53 = vmatprep.subr.mxu0 0.0
    %54 = vmatpush1.msra.mxu0 0.0
    %55 = vmatprep.subr.mxu0 0.0
    %56 = vmatpush1.msra.mxu0 0.0
    %57 = vmatprep.subr.mxu0 0.0
    %58 = vmatpush1.msra.mxu0 0.0
    %59 = vmatprep.subr.mxu0 0.0
    %60 = vmatpush1.msra.mxu0 0.0
    %61 = vmatprep.subr.mxu0 0.0
    %62 = vmatpush1.msra.mxu0 0.0
    %63 = vmatprep.subr.mxu0 0.0
    %64 = vmatpush1.msra.mxu0 0.0
    %65 = vmatprep.subr.mxu0 0.0
    %66 = vmatpush1.msra.mxu0 0.0
    %67 = vmatprep.subr.mxu0 0.0
    %68 = vmatpush1.msra.mxu0 0.0
    %69 = vmatprep.subr.mxu0 0.0
    %70 = vmatpush1.msra.mxu0 0.0
    %71 = vmatprep.subr.mxu0 0.0
    %72 = vmatpush1.msra.mxu0 0.0
    %73 = vmatprep.subr.mxu0 0.0
    %74 = vmatpush1.msra.mxu0 0.0
    %75 = vmatprep.subr.mxu0 0.0
    %76 = vmatpush1.msra.mxu0 0.0
    %77 = vmatprep.subr.mxu0 0.0
    %78 = vmatpush1.msra.mxu0 0.0
    %79 = vmatprep.subr.mxu0 0.0
    %80 = vmatpush1.msra.mxu0 0.0
    %81 = vmatprep.subr.mxu0 0.0
    %82 = vmatpush1.msra.mxu0 0.0
    %83 = vmatprep.subr.mxu0 0.0
    %84 = vmatpush1.msra.mxu0 0.0
    %85 = vmatprep.subr.mxu0 0.0
    %86 = vmatpush1.msra.mxu0 0.0
    %87 = vmatprep.subr.mxu0 0.0
    %88 = vmatpush1.msra.mxu0 0.0
    %89 = vmatprep.subr.mxu0 0.0
    %90 = vmatpush1.msra.mxu0 0.0
    %91 = vmatprep.subr.mxu0 0.0
    %92 = vmatpush1.msra.mxu0 0.0
    %93 = vmatprep.mubr.f32.mxu0 0.0
    %94 = vmatmul.mubr.f32.gmra.mrb[0].mxu0 %v23
    %v95 = vpop.f32.mrb[0].mxu0
    %v96 = vadd.f32 0.0, %v95
    %v97 = vpop.f32.mrb[0].mxu0
    %98 = vdwg.mxu0
    %s99 = smul.u32 0, 8
    %v100 = vlaneseq
    %v101 = vshrl.u32 %v100, 7
    %v102 = vstv %s99
    %v103 = vadd.s32 %v102, %v101
    %vm104 = vcmp.lt.s32.totalorder %v103, 8
    %v105 = vlog2.pop %v96
    %v106 = vmul.f32 %v105, 0.6931472
    %v107 = vsub.f32 0.0, %v106
    %v108 = vsel %vm104, %v107, 0.0
    %vm109 = vcmask 7168
    %v110 = vsel %vm109, %v108, 0.0
    %v111 = vrot.slane %v110, 4
    %v112 = vadd.f32 %v110, %v111
    %v113 = vrot.slane %v112, 2
    %v114 = vadd.f32 %v112, %v113
    %v115 = vrot.slane %v114, 1
    %v116 = vadd.f32 %v114, %v115
    %118 = vset.pattern.permute.xlu0 0
    %119 = vperm.xlu0 %118, %v116
    %v120 = vpop.permute.xlu0 %119
    %122 = vst [vmem:[#allocation2] sm:$0xff] %v120
    // Predicated region
    $region10: #{tpu_custom_call.1} parent=1 // pred_check
      _
    $region11: #{tpu_custom_call.1} parent=1 // pred_check_branch
      %124 = sbr.rel (0) target = $region13
    $region12: #{tpu_custom_call.1} parent=1 // pred_region
      %s126 = ssub.s32 128, 128
      %127 = vsyncadd [#allocation3], %s126
      %s129 = sshll.u32 [#allocation2], 4
      %s130 = int_to_ptr.vmem [resolvable:$true] %s129
      %132 = dma.vmem_to_hbm [thread:$0]  %s130, 128, %s2, [#allocation3]
    $region13: #{tpu_custom_call.1} parent=1 // pred_fallthru
      _
    // Predicated region
    $region14: #{tpu_custom_call.1} parent=1 // pred_check
      _
    $region15: #{tpu_custom_call.1} parent=1 // pred_check_branch
      %134 = sbr.rel (0) target = $region17
    $region16: #{tpu_custom_call.1} parent=1 // pred_region
      %135 = dma.done [#allocation3], 128
    $region17: #{tpu_custom_call.1} parent=1 // pred_fallthru
      _
    %136 = vsyncpa [#allocation3], 1

</llo_original>
